<compile_context>
chip_gen: v7x
topology: tpu7x:2x2x1
jax: 0.10.0
libtpu: 0.0.40
codegen_flags: <defaults>
</compile_context>

<pallas_src>
import functools

import jax
import jax.numpy as jnp
from jax.experimental import pallas as pl
from jax.experimental.pallas import tpu as pltpu

_LANE = 128
_SUBLANE = 8
_MAX_1D_ELEMS = 262_144          # ceiling for the fused single-block 1-D path


def _round_up(x, m):
    return (x + m - 1) // m * m


def _tpu_vmem_capacity_bytes():
    try:
        cap = int(pltpu.get_tpu_info().vmem_capacity_bytes)
        if cap > 0:
            return cap
    except Exception:
        pass
    return 64 * 1024 * 1024      # conservative fallback: v7x per-TensorCore VMEM


def _vmem_limit_bytes(cap):
    # Raise v5e's 16 MiB scoped default; never ask for more than half of physical.
    return int(min(cap // 2, 64 * 1024 * 1024))


def _block_elem_budget(cap):
    # Per-input, per-pipeline-buffer element budget (sized as f32): ~2 MiB on
    # v7x (64 MiB VMEM), ~4 MiB on v5e/v6e (128 MiB).  Keeps 2 inputs x 2
    # pipeline buffers plus Mosaic's f32 elementwise temporaries well under the
    # vmem limit while still amortizing the ~0.35us per-grid-step overhead.
    per_buf_bytes = min(max(cap // 32, 2 * 1024 * 1024), 4 * 1024 * 1024)
    return per_buf_bytes // 4


def _pick_tiles(B, D, budget_elems):
    """Pick (TB, TD): batch-row tile and feature-lane tile sizes."""
    d_pad = _round_up(D, _LANE)
    if B * min(d_pad, 4 * _LANE) <= budget_elems:
        # Whole batch fits with at least a 512-wide lane tile: keep TB=B, widen TD.
        TB = B
        TD = min((budget_elems // max(B, 1)) // _LANE * _LANE, d_pad, 64 * _LANE)
        if TD >= D:
            TD = D
    else:
        # Large batch: fix a wide lane tile and tile the batch rows.
        TD = min(d_pad, 16 * _LANE)
        if TD >= D:
            TD = D
        lanes = _round_up(TD, _LANE)
        TB = max(_SUBLANE, (budget_elems // lanes) // _SUBLANE * _SUBLANE)
        if TB >= B:
            TB = B
    return TB, TD


# ---------------------------------------------------------------------------
# Stage 1: streaming kernel -> per-sample mean squared error, shape (B, 1) f32.
# grid = (num batch tiles [parallel], num feature tiles [arbitrary/reduction]).
# ---------------------------------------------------------------------------
def _persample_mse_kernel(x_ref, y_ref, out_ref, acc_ref, *, D, TD, mask_tail):
    d = pl.program_id(1)

    @pl.when(d == 0)
    def _init():
        acc_ref[...] = jnp.zeros_like(acc_ref)

    # Cast once per tile, in VMEM (native dtype travels over HBM).
    x = x_ref[...].astype(jnp.float32)
    y = y_ref[...].astype(jnp.float32)
    diff = x - y
    sq = diff * diff                                        # VPU hot path
    if mask_tail:
        # Last feature tile may read past the end of D; zero out-of-range lanes
        # with a select (garbage/NaN padding cannot propagate).
        lane = jax.lax.broadcasted_iota(jnp.int32, sq.shape, 1)
        sq = jnp.where(d * TD + lane < D, sq, 0.0)

    if TD % _LANE == 0:
        # Lane-dense accumulate: plain VPU adds of lane-aligned 128-wide slices,
        # no cross-lane (XLU) reduce in the hot loop.
        acc = acc_ref[...]
        for i in range(TD // _LANE):                        # static, small unroll
            acc = acc + sq[:, i * _LANE:(i + 1) * _LANE]
        acc_ref[...] = acc
    else:
        # TD == D (single feature tile, D not a multiple of 128): one-off reduce.
        acc_ref[...] += jnp.sum(sq, axis=1, keepdims=True)

    @pl.when(d == pl.num_programs(1) - 1)
    def _finalize():
        # Single cross-lane reduce per batch tile; rows past B (partial batch
        # block) land in the output's padded region and are discarded.
        out_ref[...] = (jnp.sum(acc_ref[...], axis=1, keepdims=True)
                        * jnp.float32(1.0 / D))


def _persample_losses(x, y, *, feature_tile=None, batch_tile=None):
    B, D = x.shape
    cap = _tpu_vmem_capacity_bytes()
    TB, TD = _pick_tiles(B, D, _block_elem_budget(cap))
    if feature_tile is not None:
        TD = D if feature_tile >= D else max(_LANE, feature_tile // _LANE * _LANE)
    if batch_tile is not None:
        TB = B if batch_tile >= B else max(_SUBLANE, batch_tile // _SUBLANE * _SUBLANE)

    nb = pl.cdiv(B, TB)
    nd = pl.cdiv(D, TD)
    mask_tail = (D % TD) != 0
    acc_lanes = _LANE if TD % _LANE == 0 else 1

    kernel = functools.partial(_persample_mse_kernel, D=D, TD=TD, mask_tail=mask_tail)
    return pl.pallas_call(
        kernel,
        out_shape=jax.ShapeDtypeStruct((B, 1), jnp.float32),
        grid_spec=pltpu.PrefetchScalarGridSpec(
            num_scalar_prefetch=0,
            grid=(nb, nd),
            in_specs=[pl.BlockSpec((TB, TD), lambda b, d: (b, d)),
                      pl.BlockSpec((TB, TD), lambda b, d: (b, d))],
            out_specs=pl.BlockSpec((TB, 1), lambda b, d: (b, 0)),
            scratch_shapes=[pltpu.VMEM((TB, acc_lanes), jnp.float32)],
        ),
        compiler_params=pltpu.CompilerParams(
            dimension_semantics=("parallel", "arbitrary"),
            vmem_limit_bytes=_vmem_limit_bytes(cap)),
    )(x, y)


# ---------------------------------------------------------------------------
# Shared OUSM reduction: sum of valid values minus their k largest, normalized.
# ---------------------------------------------------------------------------
def _reduce_drop_k(values, *, k, B):
    R, L = values.shape
    flat = (jax.lax.broadcasted_iota(jnp.int32, (R, L), 0) * L
            + jax.lax.broadcasted_iota(jnp.int32, (R, L), 1))
    valid = flat < B
    total = jnp.sum(jnp.where(valid, values, 0.0))
    if k <= 0 or (B - k) <= 0:
        return total * jnp.float32(1.0 / B)                 # plain mean
    work = jnp.where(valid, values, -jnp.inf)
    if k == 1:                                              # module default: fast path
        total = total - jnp.max(work)
    else:
        for _ in range(k):                                  # k small & static -> unrolled
            m = jnp.max(work)
            first = jnp.min(jnp.where(work == m, flat, R * L))   # drop exactly one
            work = jnp.where(flat == first, -jnp.inf, work)
            total = total - m
    return total * jnp.float32(1.0 / (B - k))


# ---------------------------------------------------------------------------
# Stage 2: epilogue over the (tiny) per-sample loss vector, packed lane-dense.
# ---------------------------------------------------------------------------
def _drop_k_mean_kernel(l_ref, out_ref, *, k, B):
    out_ref[...] = jnp.reshape(_reduce_drop_k(l_ref[...], k=k, B=B), (1, 1))


def _drop_k_mean(per_sample, *, k, B):
    flat = per_sample.reshape(-1).astype(jnp.float32)
    R = pl.cdiv(B, _LANE)
    pad = R * _LANE - B
    if pad:
        flat = jnp.pad(flat, (0, pad))
    packed = flat.reshape(R, _LANE)
    # TODO(synk): single-block epilogue; for batches of many millions of samples
    # this reduction should itself be tiled.
    cap = _tpu_vmem_capacity_bytes()
    out = pl.pallas_call(
        functools.partial(_drop_k_mean_kernel, k=k, B=B),
        out_shape=jax.ShapeDtypeStruct((1, 1), jnp.float32),
        compiler_params=pltpu.CompilerParams(
            vmem_limit_bytes=_vmem_limit_bytes(cap)),
    )(packed)
    return out[0, 0]


# ---------------------------------------------------------------------------
# Fused 1-D path (typical (B,1) regression logits after squeeze): one kernel,
# lane-dense (ceil(B/128), 128) packing, no intermediate per-sample array.
# ---------------------------------------------------------------------------
def _mse_1d_kernel(x_ref, y_ref, out_ref, *, k, B):
    x = x_ref[...].astype(jnp.float32)
    y = y_ref[...].astype(jnp.float32)
    sq = (x - y) * (x - y)                    # zero padding contributes exactly 0
    out_ref[...] = jnp.reshape(_reduce_drop_k(sq, k=k, B=B), (1, 1))


def _ousm_loss_1d(x, y, *, k):
    B = x.shape[0]
    R = pl.cdiv(B, _LANE)
    pad = R * _LANE - B
    if pad:
        x = jnp.pad(x, (0, pad))
        y = jnp.pad(y, (0, pad))
    out = pl.pallas_call(
        functools.partial(_mse_1d_kernel, k=k, B=B),
        out_shape=jax.ShapeDtypeStruct((1, 1), jnp.float32),
    )(x.reshape(R, _LANE), y.reshape(R, _LANE))
    return out[0, 0]


# ---------------------------------------------------------------------------
# Public wrapper (mirrors OUSMLoss.forward with loss='MSELoss').
# ---------------------------------------------------------------------------
def ousm_loss(logits, targets, *, k=1, ousm=False, feature_tile=None, batch_tile=None):
    """JAX/Pallas equivalent of OUSMLoss(k=k, loss='MSELoss', ousm=ousm)(logits, targets)."""
    # _check_input_type('MSELoss'): squeeze trailing singleton dim of logits.
    # (targets -> float happens inside the kernels; native dtype over HBM.)
    if logits.ndim > 1 and logits.shape[-1] == 1:
        logits = jnp.squeeze(logits, axis=-1)
    if targets.shape != logits.shape and targets.size == logits.size:
        targets = targets.reshape(logits.shape)

    if logits.ndim == 1:
        B = logits.shape[0]
        keff = k if (ousm and B - k > 0) else 0
        if B <= _MAX_1D_ELEMS:
            return _ousm_loss_1d(logits, targets, k=keff)
        # Huge 1-D batches: stream through the batch-tiled 2-D path (D == 1).
        # TODO(synk): lane-width-1 blocks are bandwidth-suboptimal here.
        logits = logits.reshape(B, 1)
        targets = targets.reshape(B, 1)

    if logits.ndim > 2:
        # TODO(synk): PyTorch's OUSM branch for >2-D unreduced losses (topk over
        # the last axis) is not reproduced; we flatten and reduce per sample.
        logits = logits.reshape(logits.shape[0], -1)
        targets = targets.reshape(targets.shape[0], -1)

    B, D = logits.shape
    keff = k if (ousm and B - k > 0) else 0
    per_sample = _persample_losses(logits, targets,
                                   feature_tile=feature_tile, batch_tile=batch_tile)
    return _drop_k_mean(per_sample, k=keff, B=B)


# ---------------------------------------------------------------------------
# Pure-JAX reference mirroring the PyTorch forward.
# ---------------------------------------------------------------------------
def _ousm_loss_ref(logits, targets, *, k=1, ousm=False):
    if logits.ndim > 1 and logits.shape[-1] == 1:
        logits = jnp.squeeze(logits, axis=-1)
    logits = logits.astype(jnp.float32)
    targets = targets.reshape(logits.shape).astype(jnp.float32)
    bs = logits.shape[0]
    if ousm and bs - k > 0:
        losses = (logits - targets) ** 2
        if losses.ndim == 2:
            losses = losses.mean(axis=1)
        kept = jnp.sort(losses)[: bs - k]   # drop k largest == keep bs-k smallest
        return kept.mean()
    return jnp.mean((logits - targets) ** 2)


if __name__ == "__main__":
    key = jax.random.PRNGKey(0)
    k1, k2, k3, k4 = jax.random.split(key, 4)

    def check(a, b, msg, tol=1e-5):
        a = jax.block_until_ready(a)
        assert jnp.allclose(a, b, rtol=tol, atol=tol), (msg, a, b)

    # --- 2-D (batch=8, hidden=32), f32 ---
    B, D = 8, 32
    logits = jax.random.normal(k1, (B, D), dtype=jnp.float32)
    targets = jax.random.normal(k2, (B, D), dtype=jnp.float32)
    check(ousm_loss(logits, targets, k=1, ousm=False),
          _ousm_loss_ref(logits, targets, k=1, ousm=False), "2d plain mse")
    check(ousm_loss(logits, targets, k=1, ousm=True),
          _ousm_loss_ref(logits, targets, k=1, ousm=True), "2d ousm k=1")
    check(ousm_loss(logits, targets, k=2, ousm=True),
          _ousm_loss_ref(logits, targets, k=2, ousm=True), "2d ousm k=2")

    # --- native bf16 inputs (no wrapper upcast; cast happens per tile in VMEM) ---
    lb = logits.astype(jnp.bfloat16)
    tb = targets.astype(jnp.bfloat16)
    check(ousm_loss(lb, tb, k=1, ousm=True),
          _ousm_loss_ref(lb, tb, k=1, ousm=True), "2d ousm bf16", tol=1e-4)

    # --- (B, 1) regression logits -> squeezed, lane-dense fused 1-D path ---
    B1 = 10
    logits1 = jax.random.normal(k3, (B1, 1), dtype=jnp.float32)
    targets1 = jax.random.normal(k4, (B1,), dtype=jnp.float32)
    check(ousm_loss(logits1, targets1, k=1, ousm=False),
          _ousm_loss_ref(logits1, targets1, k=1, ousm=False), "1d plain mse")
    check(ousm_loss(logits1, targets1, k=1, ousm=True),
          _ousm_loss_ref(logits1, targets1, k=1, ousm=True), "1d ousm k=1")

    # --- multi-tile grid: parallel batch axis (nb=3, partial last batch block),
    #     masked feature tail (320 = 2x128 + 64), forced small tiles ---
    B2, D2 = 20, 320
    logits2 = jax.random.normal(k1, (B2, D2), dtype=jnp.float32)
    targets2 = jax.random.normal(k2, (B2, D2), dtype=jnp.float32)
    check(ousm_loss(logits2, targets2, k=1, ousm=True, feature_tile=128, batch_tile=8),
          _ousm_loss_ref(logits2, targets2, k=1, ousm=True), "2d ousm tiled")
    check(ousm_loss(logits2, targets2, k=3, ousm=True, feature_tile=128, batch_tile=8),
          _ousm_loss_ref(logits2, targets2, k=3, ousm=True), "2d ousm k=3 tiled")
    check(ousm_loss(logits2, targets2, k=1, ousm=False, feature_tile=128, batch_tile=8),
          _ousm_loss_ref(logits2, targets2, k=1, ousm=False), "2d plain tiled")

    print("KERNEL_OK")
</pallas_src>

<mosaic_0001>
module attributes {stable_mosaic.version = 11 : i64} {
  func.func @_persample_mse_kernel(%arg0: i32, %arg1: i32, %arg2: memref<8x32xf32, #tpu.memory_space<vmem>>, %arg3: memref<8x32xf32, #tpu.memory_space<vmem>>, %arg4: memref<8x1xf32, #tpu.memory_space<vmem>>, %arg5: memref<8x1xf32, #tpu.memory_space<vmem>>) attributes {dimension_semantics = [#tpu.dimension_semantics<parallel>, #tpu.dimension_semantics<arbitrary>], iteration_bounds = array<i64: 1, 1>, scalar_prefetch = 0 : i64, scratch_operands = 1 : i64, tpu.core_type = #tpu.core_type<tc>, window_params = [{transform_indices = @transform_0, window_bounds = array<i64: 8, 32>}, {transform_indices = @transform_1, window_bounds = array<i64: 8, 32>}, {transform_indices = @transform_2, window_bounds = array<i64: 8, 1>}]} {
    %c0_i32 = arith.constant 0 : i32
    %0 = arith.cmpi eq, %arg1, %c0_i32 : i32
    %1 = arith.extui %0 : i1 to i32
    %c0_i32_0 = arith.constant 0 : i32
    %2 = arith.cmpi ne, %1, %c0_i32_0 : i32
    scf.if %2 {
      %cst_10 = arith.constant 0.000000e+00 : f32
      %15 = vector.broadcast %cst_10 : f32 to vector<8x1xf32>
      %c0_11 = arith.constant 0 : index
      %c0_12 = arith.constant 0 : index
      %16 = vector.load %arg5[%c0_11, %c0_12] : memref<8x1xf32, #tpu.memory_space<vmem>>, vector<8x1xf32>
      tpu.vector_store %arg5[%c0_11, %c0_12], %15 {strides = array<i32>} : memref<8x1xf32, #tpu.memory_space<vmem>>, vector<8x1xf32>,
    } else {
    }
    %c0 = arith.constant 0 : index
    %c0_1 = arith.constant 0 : index
    %3 = vector.load %arg2[%c0, %c0_1] : memref<8x32xf32, #tpu.memory_space<vmem>>, vector<8x32xf32>
    %c0_2 = arith.constant 0 : index
    %c0_3 = arith.constant 0 : index
    %4 = vector.load %arg3[%c0_2, %c0_3] : memref<8x32xf32, #tpu.memory_space<vmem>>, vector<8x32xf32>
    %5 = arith.subf %3, %4 : vector<8x32xf32>
    %6 = arith.mulf %5, %5 : vector<8x32xf32>
    %c0_4 = arith.constant 0 : index
    %c0_5 = arith.constant 0 : index
    %7 = vector.load %arg5[%c0_4, %c0_5] : memref<8x1xf32, #tpu.memory_space<vmem>>, vector<8x1xf32>
    %cst = arith.constant dense<0.000000e+00> : vector<8xf32>
    %8 = vector.multi_reduction <add>, %6, %cst [1] : vector<8x32xf32> to vector<8xf32>
    %9 = vector.shape_cast %8 : vector<8xf32> to vector<8x1xf32>
    %10 = arith.addf %7, %9 : vector<8x1xf32>
    %c0_6 = arith.constant 0 : index
    %c0_7 = arith.constant 0 : index
    %11 = vector.load %arg5[%c0_6, %c0_7] : memref<8x1xf32, #tpu.memory_space<vmem>>, vector<8x1xf32>
    tpu.vector_store %arg5[%c0_6, %c0_7], %10 {strides = array<i32>} : memref<8x1xf32, #tpu.memory_space<vmem>>, vector<8x1xf32>,
    %c0_i32_8 = arith.constant 0 : i32
    %12 = arith.cmpi eq, %arg1, %c0_i32_8 : i32
    %13 = arith.extui %12 : i1 to i32
    %c0_i32_9 = arith.constant 0 : i32
    %14 = arith.cmpi ne, %13, %c0_i32_9 : i32
    scf.if %14 {
      %c0_10 = arith.constant 0 : index
      %c0_11 = arith.constant 0 : index
      %15 = vector.load %arg5[%c0_10, %c0_11] : memref<8x1xf32, #tpu.memory_space<vmem>>, vector<8x1xf32>
      %cst_12 = arith.constant dense<0.000000e+00> : vector<8xf32>
      %16 = vector.multi_reduction <add>, %15, %cst_12 [1] : vector<8x1xf32> to vector<8xf32>
      %17 = vector.shape_cast %16 : vector<8xf32> to vector<8x1xf32>
      %cst_13 = arith.constant 3.125000e-02 : f32
      %18 = vector.broadcast %cst_13 : f32 to vector<8x1xf32>
      %19 = arith.mulf %17, %18 : vector<8x1xf32>
      %c0_14 = arith.constant 0 : index
      %c0_15 = arith.constant 0 : index
      %20 = vector.load %arg4[%c0_14, %c0_15] : memref<8x1xf32, #tpu.memory_space<vmem>>, vector<8x1xf32>
      tpu.vector_store %arg4[%c0_14, %c0_15], %19 {strides = array<i32>} : memref<8x1xf32, #tpu.memory_space<vmem>>, vector<8x1xf32>,
    } else {
    }
    return
  }
  func.func @transform_0(%arg0: i32, %arg1: i32) -> (i32, i32) {
    %c0_i32 = arith.constant 0 : i32
    return %arg0, %arg1 : i32, i32
  }
  func.func @transform_1(%arg0: i32, %arg1: i32) -> (i32, i32) {
    %c0_i32 = arith.constant 0 : i32
    return %arg0, %arg1 : i32, i32
  }
  func.func @transform_2(%arg0: i32, %arg1: i32) -> (i32, i32) {
    %c0_i32 = arith.constant 0 : i32
    %c0_i32_0 = arith.constant 0 : i32
    return %arg0, %c0_i32 : i32, i32
  }
}

</mosaic_0001>

<llo_original>
// kernel: tpu_custom_call.1
$region0: #{tpu_custom_call.1}
  #allocation0 [shape = 'u32[]', space=smem, size = 0x4, offset = 0x4, fixed_abs, tag = 'smem constant byte address 0x4 - core index']
  #allocation1 [shape = 'u32[144,128]{1,0:T(1,128)}', space=vmem, size = 0x12000, scoped, tag = 'internal scratch']
  #allocation2 [shape = 'f32[8,1]{1,0:T(8,128)}', space=vmem, size = 0x1000, scoped, tag = 'scratch operand']
  %s0 = inlined_call_operand.hbm [shape: f32[8,32], index: 0, kind: input, shape index: {}]
  %s1 = inlined_call_operand.hbm [shape: f32[8,32], index: 1, kind: input, shape index: {}]
  %s2 = inlined_call_operand.vmem [shape: f32[8,1], index: 2, kind: output, shape index: {}]
  %s3 = sld [smem:[#allocation0]]
  $region34: #{tpu_custom_call.1} parent=0
    _
  %s5 = ssub.s32 1, %s3
  %s6 = scalar_select 0, %s5, %s3
  $region1: #{tpu_custom_call.1} parent=0
    #allocation3 [shape = 'u8[4096]{0}', space=vmem, size = 0x1000, scoped, tag = 'input window, operand 0, single buffered']
    #allocation4 [shape = 's32[1]{0}', space=sflag, size = 0x4, scoped, tag = 'scoped memory for tpu_custom_call.1']
    #allocation5 [shape = 'u8[4096]{0}', space=vmem, size = 0x1000, scoped, tag = 'input window, operand 1, single buffered']
    #allocation6 [shape = 's32[1]{0}', space=sflag, size = 0x4, scoped, tag = 'scoped memory for tpu_custom_call.1']
    %7 = vsyncpa [#allocation4], 0
    %8 = vsyncpa [#allocation6], 0
    // Predicated region
    $region2: #{tpu_custom_call.1} parent=1 // pred_check
      _
    $region3: #{tpu_custom_call.1} parent=1 // pred_check_branch
      %10 = sbr.rel (0) target = $region5
    $region4: #{tpu_custom_call.1} parent=1 // pred_region
      %s12 = ssub.s32 128, 128
      %13 = vsyncadd [#allocation4], %s12
      %s15 = sshll.u32 [#allocation3], 4
      %s16 = int_to_ptr.vmem [resolvable:$true] %s15
      %18 = dma.hbm_to_vmem [thread:$0]  %s0, 128, %s16, [#allocation4]
    $region5: #{tpu_custom_call.1} parent=1 // pred_fallthru
      _
    // Predicated region
    $region6: #{tpu_custom_call.1} parent=1 // pred_check
      _
    $region7: #{tpu_custom_call.1} parent=1 // pred_check_branch
      %20 = sbr.rel (0) target = $region9
    $region8: #{tpu_custom_call.1} parent=1 // pred_region
      %s22 = ssub.s32 128, 128
      %23 = vsyncadd [#allocation6], %s22
      %s25 = sshll.u32 [#allocation5], 4
      %s26 = int_to_ptr.vmem [resolvable:$true] %s25
      %28 = dma.hbm_to_vmem [thread:$0]  %s1, 128, %s26, [#allocation6]
    $region9: #{tpu_custom_call.1} parent=1 // pred_fallthru
      _
    // Predicated region
    $region10: #{tpu_custom_call.1} parent=1 // pred_check
      _
    $region11: #{tpu_custom_call.1} parent=1 // pred_check_branch
      %30 = sbr.rel (0) target = $region13
    $region12: #{tpu_custom_call.1} parent=1 // pred_region
      %31 = dma.done [#allocation4], 128
    $region13: #{tpu_custom_call.1} parent=1 // pred_fallthru
      _
    // Predicated region
    $region14: #{tpu_custom_call.1} parent=1 // pred_check
      _
    $region15: #{tpu_custom_call.1} parent=1 // pred_check_branch
      %33 = sbr.rel (0) target = $region17
    $region16: #{tpu_custom_call.1} parent=1 // pred_region
      %34 = dma.done [#allocation6], 128
    $region17: #{tpu_custom_call.1} parent=1 // pred_fallthru
      _
    %p35 = scmp.eq.s32.totalorder 0, 0
    // Predicated region
    $region18: #{tpu_custom_call.1} parent=1 // pred_check
      %p36 = pneg %p35
    $region19: #{tpu_custom_call.1} parent=1 // pred_check_branch
      %38 = sbr.rel (%p36) target = $region21
    $region20: #{tpu_custom_call.1} parent=1 // pred_region
      %vm39 = vcmask 7168
      %40 = vst.msk [vmem:[#allocation2] sm:$0xff] %vm39, 0.0
    $region21: #{tpu_custom_call.1} parent=1 // pred_fallthru
      _
    %v41 = vld [vmem:[#allocation3] sm:$0xff]
    %v42 = vld [vmem:[#allocation5] sm:$0xff]
    %v43 = vsub.f32 %v41, %v42
    %v44 = vmul.f32 %v43, %v43
    %v45 = vld [vmem:[#allocation2] sm:$0xff]
    %vm46 = vcmask 261120
    %v47 = vsel %vm46, %v44, 0.0
    %48 = vadd.xlane.f32.xlu0 %v47
    %v49 = vpop.xlane.xlu0 %48
    %v50 = vadd.f32 %v45, %v49
    %vm51 = vcmask 7168
    %52 = vst.msk [vmem:[#allocation2] sm:$0xff] %vm51, %v50
    // Predicated region
    $region22: #{tpu_custom_call.1} parent=1 // pred_check
      %p53 = pneg %p35
    $region23: #{tpu_custom_call.1} parent=1 // pred_check_branch
      %55 = sbr.rel (%p53) target = $region25
    $region24: #{tpu_custom_call.1} parent=1 // pred_region
      %v56 = vld [vmem:[#allocation2] sm:$0xff]
      %v57 = vadd.f32 %v56, 0.0
      %v58 = vmul.f32 %v57, 0.03125
      %59 = vst.msk [vmem:[%s2] sm:$0xff] %vm51, %v58
    $region25: #{tpu_custom_call.1} parent=1 // pred_fallthru
      _
    // Predicated region
    $region26: #{tpu_custom_call.1} parent=1 // pred_check
      _
    $region27: #{tpu_custom_call.1} parent=1 // pred_check_branch
      %61 = sbr.rel (0) target = $region29
    $region28: #{tpu_custom_call.1} parent=1 // pred_region
      _
    $region29: #{tpu_custom_call.1} parent=1 // pred_fallthru
      _
    // Predicated region
    $region30: #{tpu_custom_call.1} parent=1 // pred_check
      _
    $region31: #{tpu_custom_call.1} parent=1 // pred_check_branch
      %63 = sbr.rel (0) target = $region33
    $region32: #{tpu_custom_call.1} parent=1 // pred_region
      _
    $region33: #{tpu_custom_call.1} parent=1 // pred_fallthru
      _
    %64 = vsyncpa [#allocation4], 1
    %65 = vsyncpa [#allocation6], 1

</llo_original>
